<compile_context>
chip_gen: v5e
topology: v5e:2x2
jax: 0.10.0
libtpu: 0.0.40
codegen_flags: <defaults>
</compile_context>

<pallas_src>
import functools

import jax
import jax.numpy as jnp
from jax.experimental import pallas as pl
from jax.experimental.pallas import tpu as pltpu

_LANE = 128     # TPU lane width
_SUBLANE = 8    # f32 sublane count


def _round_up(x, m):
    return ((x + m - 1) // m) * m


# ----------------------------------------------------------------------------- kernel
def _linear_kernel(x_ref, w_ref, b_ref, o_ref, acc_ref, *, precision):
    # x_ref: [TB, TH], w_ref: [TH, C_pad] (pre-transposed), b_ref: [1, C_pad],
    # o_ref: [TB, C_pad], acc_ref: [TB, C_pad] f32 scratch (lives across the H axis).
    k = pl.program_id(1)

    @pl.when(k == 0)
    def _init():
        acc_ref[...] = jnp.zeros_like(acc_ref)

    # Standard [M,K] x [K,N] contraction -> MXU-native, no in-kernel transpose.
    acc_ref[...] += jax.lax.dot_general(
        x_ref[...], w_ref[...],
        dimension_numbers=(((1,), (0,)), ((), ())),
        preferred_element_type=jnp.float32,
        precision=precision,
    )

    @pl.when(k == pl.num_programs(1) - 1)
    def _finalize():
        o_ref[...] = (acc_ref[...] + b_ref[...].astype(jnp.float32)).astype(o_ref.dtype)


# ----------------------------------------------------------------------------- sizing
def _vmem_limits():
    """(vmem_limit_bytes for the compiler, byte budget for tile sizing)."""
    try:
        phys = int(pltpu.get_tpu_info().vmem_capacity_bytes)
    except Exception:
        phys = 128 * 1024 * 1024  # v5e/v6e physical; conservative fallback
    limit = max(32 * 1024 * 1024, min((phys * 3) // 4, 96 * 1024 * 1024))
    budget = int(limit * 0.85)    # leave headroom for internal scratch / semaphores
    return limit, budget


def _choose_tiles(B, H, C_pad, x_item, w_item, out_item, budget, x_buffers):
    """Pick (tile_b, tile_h, k_tiled) from the VMEM budget and grid-shaping rules."""
    B8 = _round_up(max(B, 1), _SUBLANE)
    nbuf_x = max(x_buffers, 2)

    def bytes_needed(tb, th, k_tiled):
        x_b = nbuf_x * tb * th * x_item                       # multi-buffered x tile
        w_b = (2 if k_tiled else 1) * th * C_pad * w_item     # weight tile(s)
        o_b = 2 * tb * C_pad * out_item                       # double-buffered output
        acc_b = tb * C_pad * 4                                # f32 accumulator
        return x_b + w_b + o_b + acc_b + C_pad * 4            # + bias

    probe_tb = min(B8, 256)

    # 1) keep the whole reduction (H) in one block when it fits the budget
    tile_h, k_tiled = H, False
    if H > _LANE and bytes_needed(probe_tb, H, False) > budget:
        k_tiled = True
        tile_h = min(_round_up(H, _LANE), 2048)
        while tile_h > _LANE and bytes_needed(probe_tb, tile_h, True) > budget:
            tile_h = _round_up(tile_h // 2, _LANE)
        tile_h = max(tile_h, _LANE)

    # 2) largest batch tile (multiple of 8, <= 2048 rows) that fits the budget
    per_row = nbuf_x * tile_h * x_item + 2 * C_pad * out_item + C_pad * 4
    fixed = (2 if k_tiled else 1) * tile_h * C_pad * w_item + C_pad * 4
    max_tb = max(budget - fixed, 0) // per_row
    tile_b = max(_SUBLANE, (max_tb // _SUBLANE) * _SUBLANE)
    tile_b = min(tile_b, B8, 2048)

    # 3a) prefer ~4 pipeline steps for mid-size batches (keep tiles >= 256 rows)
    if pl.cdiv(B, tile_b) < 4:
        t4 = _round_up(pl.cdiv(B, 4), _SUBLANE)
        if t4 >= 256:
            tile_b = min(tile_b, t4)
    # 3b) guarantee >= 2 "parallel" steps whenever the batch is splittable
    #     (v7x megacore + restores DMA/compute overlap)
    if pl.cdiv(B, tile_b) < 2 and B > _SUBLANE:
        tile_b = min(tile_b, _round_up(pl.cdiv(B, 2), _SUBLANE))

    return tile_b, tile_h, k_tiled


# ----------------------------------------------------------------------------- wrapper
def sentence_classify_forward(embeddings, weight, bias, *, tile_b=None,
                              precision=jax.lax.Precision.HIGHEST,
                              x_buffers=2, return_padded=False):
    """Forward pass of SentenceClassifyModel: embeddings @ weight.T + bias.

    embeddings: [B, H] (float32 or bfloat16)
    weight:     [C, H] (PyTorch nn.Linear convention)
    bias:       [C]
    returns     [B, C] (or [B, C_pad] lane-dense logits if return_padded=True)
    """
    B, H = embeddings.shape
    C, H_w = weight.shape
    assert H_w == H, "weight must be [classes, hidden_size]"

    # Lane-dense output: pad classes to a multiple of 128 lanes (unmasked stores).
    C_pad = _round_up(C, _LANE)
    if C_pad != C:
        weight = jnp.pad(weight, ((0, C_pad - C), (0, 0)))
        bias = jnp.pad(bias, (0, C_pad - C))
    # One-time XLA transpose in the wrapper -> kernel RHS is already [K, N].
    w_t = weight.T                      # [H, C_pad]
    b2 = bias.reshape(1, C_pad)

    x_item = jnp.dtype(embeddings.dtype).itemsize
    w_item = jnp.dtype(w_t.dtype).itemsize
    out_item = x_item
    vmem_limit, budget = _vmem_limits()

    auto_tb, tile_h, k_tiled = _choose_tiles(
        B, H, C_pad, x_item, w_item, out_item, budget, x_buffers)
    if tile_b is None:
        tile_b = auto_tb
    else:
        tile_b = max(_SUBLANE, min(_round_up(tile_b, _SUBLANE), _round_up(B, _SUBLANE)))

    # Pad H only when the reduction axis is tiled (zero pads contribute nothing).
    x = embeddings
    H_pad = _round_up(H, tile_h) if k_tiled else H
    if H_pad != H:
        x = jnp.pad(x, ((0, 0), (0, H_pad - H)))
        w_t = jnp.pad(w_t, ((0, H_pad - H), (0, 0)))

    grid = (pl.cdiv(B, tile_b), pl.cdiv(H_pad, tile_h))
    k_steps = grid[1]

    # Advisory cost: account for multi-pass f32 MXU emulation + padded output bytes.
    if embeddings.dtype == jnp.float32:
        passes = {jax.lax.Precision.DEFAULT: 1,
                  jax.lax.Precision.HIGH: 3,
                  jax.lax.Precision.HIGHEST: 6}.get(precision, 1)
    else:
        passes = 1
    cost = pl.CostEstimate(
        flops=2 * B * H_pad * C_pad * passes,
        transcendentals=0,
        bytes_accessed=(B * H_pad * x_item + H_pad * C_pad * w_item
                        + C_pad * 4 + B * C_pad * out_item),
    )

    # Block specs.
    if x_buffers == 2:
        x_spec = pl.BlockSpec((tile_b, tile_h), lambda i, k: (i, k))
    else:  # deeper buffering on the only per-step-varying operand if DMA is exposed
        x_spec = pl.BlockSpec((tile_b, tile_h), lambda i, k: (i, k),
                              pipeline_mode=pl.Buffered(x_buffers))
    if k_steps == 1:
        # Grid-invariant weight: single buffer saves VMEM.
        w_spec = pl.BlockSpec((tile_h, C_pad), lambda i, k: (0, 0),
                              pipeline_mode=pl.Buffered(1))
    else:
        w_spec = pl.BlockSpec((tile_h, C_pad), lambda i, k: (k, 0))
    b_spec = pl.BlockSpec((1, C_pad), lambda i, k: (0, 0),
                          pipeline_mode=pl.Buffered(1))
    o_spec = pl.BlockSpec((tile_b, C_pad), lambda i, k: (i, 0))

    out_padded = pl.pallas_call(
        functools.partial(_linear_kernel, precision=precision),
        out_shape=jax.ShapeDtypeStruct((B, C_pad), embeddings.dtype),
        grid_spec=pltpu.PrefetchScalarGridSpec(
            num_scalar_prefetch=0,
            grid=grid,
            in_specs=[x_spec, w_spec, b_spec],
            out_specs=o_spec,
            scratch_shapes=[pltpu.VMEM((tile_b, C_pad), jnp.float32)],
        ),
        compiler_params=pltpu.CompilerParams(
            dimension_semantics=("parallel", "arbitrary"),
            vmem_limit_bytes=vmem_limit,
        ),
        cost_estimate=cost,
    )(x, w_t, b2)

    if return_padded:
        # Consumers (softmax / cross-entropy) can mask the pad lanes and avoid a
        # second [B, C] pass over HBM.
        return out_padded
    return out_padded[:, :C]


# ----------------------------------------------------------------------------- demo
if __name__ == "__main__":
    key = jax.random.PRNGKey(0)
    k_x, k_w, k_b, k_x2, k_x3 = jax.random.split(key, 5)

    # Small shapes consistent with the module (hidden_size -> 32, classes=2).
    batch, hidden_size, classes = 8, 32, 2
    embeddings = jax.random.normal(k_x, (batch, hidden_size), dtype=jnp.float32)
    bound = 1.0 / (hidden_size ** 0.5)
    weight = jax.random.uniform(k_w, (classes, hidden_size),
                                minval=-bound, maxval=bound, dtype=jnp.float32)
    bias = jax.random.uniform(k_b, (classes,),
                              minval=-bound, maxval=bound, dtype=jnp.float32)

    # 1) strict f32 parity path (Precision.HIGHEST default).
    logits = sentence_classify_forward(embeddings, weight, bias)
    jax.block_until_ready(logits)
    ref = embeddings @ weight.T + bias
    assert logits.shape == (batch, classes)
    assert jnp.allclose(logits, ref, atol=1e-5, rtol=1e-5)

    # 2) multi-step "parallel" grid with a ragged tail (B not a multiple of tile_b).
    batch2 = 40
    embeddings2 = jax.random.normal(k_x2, (batch2, hidden_size), dtype=jnp.float32)
    logits2 = sentence_classify_forward(embeddings2, weight, bias, tile_b=16)
    jax.block_until_ready(logits2)
    ref2 = embeddings2 @ weight.T + bias
    assert logits2.shape == (batch2, classes)
    assert jnp.allclose(logits2, ref2, atol=1e-5, rtol=1e-5)

    # 3) bandwidth-oriented bf16 input path (f32 MXU accumulation, bf16 output).
    batch3 = 64
    x3 = jax.random.normal(k_x3, (batch3, hidden_size),
                           dtype=jnp.float32).astype(jnp.bfloat16)
    w3 = weight.astype(jnp.bfloat16)
    b3 = bias.astype(jnp.bfloat16)
    logits3 = sentence_classify_forward(x3, w3, b3,
                                        precision=jax.lax.Precision.DEFAULT)
    jax.block_until_ready(logits3)
    ref3 = x3.astype(jnp.float32) @ w3.astype(jnp.float32).T + b3.astype(jnp.float32)
    assert logits3.shape == (batch3, classes)
    assert jnp.allclose(logits3.astype(jnp.float32), ref3, atol=3e-2, rtol=3e-2)

    print("KERNEL_OK")
</pallas_src>

<mosaic_0001>
module attributes {stable_mosaic.version = 11 : i64} {
  func.func @_linear_kernel(%arg0: i32, %arg1: i32, %arg2: memref<8x32xf32, #tpu.memory_space<vmem>>, %arg3: memref<32x128xf32, #tpu.memory_space<vmem>>, %arg4: memref<1x128xf32, #tpu.memory_space<vmem>>, %arg5: memref<8x128xf32, #tpu.memory_space<vmem>>, %arg6: memref<8x128xf32, #tpu.memory_space<vmem>>) attributes {dimension_semantics = [#tpu.dimension_semantics<parallel>, #tpu.dimension_semantics<arbitrary>], iteration_bounds = array<i64: 1, 1>, scalar_prefetch = 0 : i64, scratch_operands = 1 : i64, tpu.core_type = #tpu.core_type<tc>, window_params = [{transform_indices = @transform_0, window_bounds = array<i64: 8, 32>}, {pipeline_mode = #tpu.pipeline_mode<synchronous>, transform_indices = @transform_1, window_bounds = array<i64: 32, 128>}, {pipeline_mode = #tpu.pipeline_mode<synchronous>, transform_indices = @transform_2, window_bounds = array<i64: 1, 128>}, {transform_indices = @transform_3, window_bounds = array<i64: 8, 128>}]} {
    %c0_i32 = arith.constant 0 : i32
    %0 = arith.cmpi eq, %arg1, %c0_i32 : i32
    %1 = arith.extui %0 : i1 to i32
    %c0_i32_0 = arith.constant 0 : i32
    %2 = arith.cmpi ne, %1, %c0_i32_0 : i32
    scf.if %2 {
      %cst_10 = arith.constant 0.000000e+00 : f32
      %12 = vector.broadcast %cst_10 : f32 to vector<8x128xf32>
      %c0_11 = arith.constant 0 : index
      %c0_12 = arith.constant 0 : index
      %13 = vector.load %arg6[%c0_11, %c0_12] : memref<8x128xf32, #tpu.memory_space<vmem>>, vector<8x128xf32>
      tpu.vector_store %arg6[%c0_11, %c0_12], %12 {strides = array<i32>} : memref<8x128xf32, #tpu.memory_space<vmem>>, vector<8x128xf32>,
    } else {
    }
    %c0 = arith.constant 0 : index
    %c0_1 = arith.constant 0 : index
    %3 = vector.load %arg6[%c0, %c0_1] : memref<8x128xf32, #tpu.memory_space<vmem>>, vector<8x128xf32>
    %c0_2 = arith.constant 0 : index
    %c0_3 = arith.constant 0 : index
    %4 = vector.load %arg2[%c0_2, %c0_3] : memref<8x32xf32, #tpu.memory_space<vmem>>, vector<8x32xf32>
    %c0_4 = arith.constant 0 : index
    %c0_5 = arith.constant 0 : index
    %5 = vector.load %arg3[%c0_4, %c0_5] : memref<32x128xf32, #tpu.memory_space<vmem>>, vector<32x128xf32>
    %cst = arith.constant dense<0.000000e+00> : vector<8x128xf32>
    %6 = tpu.matmul %4, %5, %cst {dimension_numbers = #tpu.dot_dimension_numbers<[1], [0], [0], [1], [0, 0, 1, 1], [], []>, precision = #tpu.contract_precision<fp32>} : vector<8x32xf32>, vector<32x128xf32>, vector<8x128xf32> -> vector<8x128xf32>
    %7 = arith.addf %3, %6 : vector<8x128xf32>
    %c0_6 = arith.constant 0 : index
    %c0_7 = arith.constant 0 : index
    %8 = vector.load %arg6[%c0_6, %c0_7] : memref<8x128xf32, #tpu.memory_space<vmem>>, vector<8x128xf32>
    tpu.vector_store %arg6[%c0_6, %c0_7], %7 {strides = array<i32>} : memref<8x128xf32, #tpu.memory_space<vmem>>, vector<8x128xf32>,
    %c0_i32_8 = arith.constant 0 : i32
    %9 = arith.cmpi eq, %arg1, %c0_i32_8 : i32
    %10 = arith.extui %9 : i1 to i32
    %c0_i32_9 = arith.constant 0 : i32
    %11 = arith.cmpi ne, %10, %c0_i32_9 : i32
    scf.if %11 {
      %c0_10 = arith.constant 0 : index
      %c0_11 = arith.constant 0 : index
      %12 = vector.load %arg6[%c0_10, %c0_11] : memref<8x128xf32, #tpu.memory_space<vmem>>, vector<8x128xf32>
      %c0_12 = arith.constant 0 : index
      %c0_13 = arith.constant 0 : index
      %13 = vector.load %arg4[%c0_12, %c0_13] : memref<1x128xf32, #tpu.memory_space<vmem>>, vector<1x128xf32>
      %14 = vector.broadcast %13 : vector<1x128xf32> to vector<8x128xf32>
      %15 = arith.addf %12, %14 : vector<8x128xf32>
      %c0_14 = arith.constant 0 : index
      %c0_15 = arith.constant 0 : index
      %16 = vector.load %arg5[%c0_14, %c0_15] : memref<8x128xf32, #tpu.memory_space<vmem>>, vector<8x128xf32>
      tpu.vector_store %arg5[%c0_14, %c0_15], %15 {strides = array<i32>} : memref<8x128xf32, #tpu.memory_space<vmem>>, vector<8x128xf32>,
    } else {
    }
    return
  }
  func.func @transform_0(%arg0: i32, %arg1: i32) -> (i32, i32) {
    %c0_i32 = arith.constant 0 : i32
    return %arg0, %arg1 : i32, i32
  }
  func.func @transform_1(%arg0: i32, %arg1: i32) -> (i32, i32) {
    %c0_i32 = arith.constant 0 : i32
    %c0_i32_0 = arith.constant 0 : i32
    %c0_i32_1 = arith.constant 0 : i32
    return %c0_i32, %c0_i32_0 : i32, i32
  }
  func.func @transform_2(%arg0: i32, %arg1: i32) -> (i32, i32) {
    %c0_i32 = arith.constant 0 : i32
    %c0_i32_0 = arith.constant 0 : i32
    %c0_i32_1 = arith.constant 0 : i32
    return %c0_i32, %c0_i32_0 : i32, i32
  }
  func.func @transform_3(%arg0: i32, %arg1: i32) -> (i32, i32) {
    %c0_i32 = arith.constant 0 : i32
    %c0_i32_0 = arith.constant 0 : i32
    return %arg0, %c0_i32 : i32, i32
  }
}

</mosaic_0001>

<llo_original>
// kernel: tpu_custom_call.1
$region0: #{tpu_custom_call.1}
  #allocation0 [shape = 'u32[]', space=smem, size = 0x4, offset = 0x4, fixed_abs, tag = 'smem constant byte address 0x4 - core index']
  #allocation1 [shape = 'u32[72,128]{1,0:T(1,128)}', space=vmem, size = 0x9000, scoped, tag = 'internal scratch']
  #allocation2 [shape = 'f32[8,128]{1,0:T(8,128)}', space=vmem, size = 0x1000, scoped, tag = 'scratch operand']
  %s0 = inlined_call_operand.hbm [shape: f32[8,32], index: 0, kind: input, shape index: {}]
  %s1 = inlined_call_operand.hbm [shape: f32[32,128], index: 1, kind: input, shape index: {}]
  %s2 = inlined_call_operand.vmem [shape: f32[1,128], index: 2, kind: input, shape index: {}]
  %s3 = inlined_call_operand.hbm [shape: f32[8,128], index: 3, kind: output, shape index: {}]
  %s4 = sld [smem:[#allocation0]]
  $region38: #{tpu_custom_call.1} parent=0
    _
  %s6 = ssub.s32 1, %s4
  %s7 = scalar_select 0, %s6, %s4
  $region1: #{tpu_custom_call.1} parent=0
    #allocation3 [shape = 'u8[4096]{0}', space=vmem, size = 0x1000, scoped, tag = 'input window, operand 0, single buffered']
    #allocation4 [shape = 's32[1]{0}', space=sflag, size = 0x4, scoped, tag = 'scoped memory for tpu_custom_call.1']
    #allocation5 [shape = 's32[1]{0}', space=sflag, size = 0x4, scoped, tag = 'scoped memory for tpu_custom_call.1']
    #allocation6 [shape = 'u8[16384]{0}', space=vmem, size = 0x4000, scoped, tag = 'input window, operand 1, single buffered']
    #allocation7 [shape = 's32[1]{0}', space=sflag, size = 0x4, scoped, tag = 'scoped memory for tpu_custom_call.1']
    #allocation8 [shape = 'u8[4096]{0}', space=vmem, size = 0x1000, scoped, tag = 'output window, operand 0, single buffered']
    %8 = vsyncpa [#allocation4], 0
    %9 = vsyncpa [#allocation7], 0
    %10 = vsyncpa [#allocation5], 0
    // Predicated region
    $region2: #{tpu_custom_call.1} parent=1 // pred_check
      _
    $region3: #{tpu_custom_call.1} parent=1 // pred_check_branch
      %12 = sbr.rel (0) target = $region5
    $region4: #{tpu_custom_call.1} parent=1 // pred_region
      %14 = vsyncadd [#allocation4], 0
      %s16 = sshll.u32 %s0, 4
      %s17 = int_to_ptr.hbm [resolvable:$true] %s16
      %s18 = sshll.u32 [#allocation3], 4
      %s19 = int_to_ptr.vmem [resolvable:$true] %s18
      %21 = dma.hbm_to_vmem [thread:$0]  %s17, 128, %s19, [#allocation4]
    $region5: #{tpu_custom_call.1} parent=1 // pred_fallthru
      _
    // Predicated region
    $region6: #{tpu_custom_call.1} parent=1 // pred_check
      _
    $region7: #{tpu_custom_call.1} parent=1 // pred_check_branch
      %23 = sbr.rel (0) target = $region9
    $region8: #{tpu_custom_call.1} parent=1 // pred_region
      %25 = vsyncadd [#allocation7], 0
      %s26 = sshll.u32 %s1, 4
      %s27 = int_to_ptr.hbm [resolvable:$true] %s26
      %s28 = sshll.u32 [#allocation6], 4
      %s29 = int_to_ptr.vmem [resolvable:$true] %s28
      %34 = dma.hbm_to_vmem [thread:$0]  %s27, 512, %s29, [#allocation7], 128, 128, 8
    $region9: #{tpu_custom_call.1} parent=1 // pred_fallthru
      _
    // Predicated region
    $region10: #{tpu_custom_call.1} parent=1 // pred_check
      _
    $region11: #{tpu_custom_call.1} parent=1 // pred_check_branch
      %36 = sbr.rel (0) target = $region13
    $region12: #{tpu_custom_call.1} parent=1 // pred_region
      _
    $region13: #{tpu_custom_call.1} parent=1 // pred_fallthru
      _
    // Predicated region
    $region14: #{tpu_custom_call.1} parent=1 // pred_check
      _
    $region15: #{tpu_custom_call.1} parent=1 // pred_check_branch
      %38 = sbr.rel (0) target = $region17
    $region16: #{tpu_custom_call.1} parent=1 // pred_region
      %40 = dma.done [#allocation4], 128
    $region17: #{tpu_custom_call.1} parent=1 // pred_fallthru
      _
    // Predicated region
    $region18: #{tpu_custom_call.1} parent=1 // pred_check
      _
    $region19: #{tpu_custom_call.1} parent=1 // pred_check_branch
      %42 = sbr.rel (0) target = $region21
    $region20: #{tpu_custom_call.1} parent=1 // pred_region
      %44 = dma.done [#allocation7], 512
    $region21: #{tpu_custom_call.1} parent=1 // pred_fallthru
      _
    %p45 = scmp.eq.s32.totalorder 0, 0
    // Predicated region
    $region22: #{tpu_custom_call.1} parent=1 // pred_check
      %p46 = pneg %p45
    $region23: #{tpu_custom_call.1} parent=1 // pred_check_branch
      %48 = sbr.rel (%p46) target = $region25
    $region24: #{tpu_custom_call.1} parent=1 // pred_region
      %49 = vst [vmem:[#allocation2] sm:$0xff] 0.0
    $region25: #{tpu_custom_call.1} parent=1 // pred_fallthru
      _
    %v50 = vld [vmem:[#allocation2] sm:$0xff]
    %v51 = vld [vmem:[#allocation3] sm:$0xff]
    %v52 = vld [vmem:[#allocation6] sm:$0xff]
    %v53 = vld [vmem:[#allocation6 + $0x8] sm:$0xff]
    %v54 = vld [vmem:[#allocation6 + $0x10] sm:$0xff]
    %v55 = vld [vmem:[#allocation6 + $0x18] sm:$0xff]
    %vm56 = vcmask 261120
    %v58 = vsel %vm56, %v51, 0
    %60 = vmatpush.msra.mxu0 0.0
    %61 = vmatpush.msra.mxu0 0.0
    %62 = vmatpush.msra.mxu0 0.0
    %63 = vmatpush.msra.mxu0 0.0
    %64 = vmatpush.msra.mxu0 0.0
    %65 = vmatpush.msra.mxu0 0.0
    %66 = vmatpush.msra.mxu0 0.0
    %67 = vmatpush.msra.mxu0 0.0
    %68 = vmatpush.msra.mxu0 0.0
    %69 = vmatpush.msra.mxu0 0.0
    %70 = vmatpush.msra.mxu0 0.0
    %71 = vmatpush.msra.mxu0 0.0
    %v72 = vand.u32 %v55, 4294901760
    %73 = vmatpush.msra.mxu0 %v72
    %v74 = vand.u32 %v54, 4294901760
    %75 = vmatpush.msra.mxu0 %v74
    %v76 = vand.u32 %v53, 4294901760
    %77 = vmatpush.msra.mxu0 %v76
    %v78 = vand.u32 %v52, 4294901760
    %79 = vmatpush.msra.mxu0 %v78
    %v80 = vand.u32 %v58, 4294901760
    %v81 = vsub.f32 %v58, %v80
    %v82 = vand.u32 %v81, 4294901760
    %v83 = vsub.f32 %v81, %v82
    %v84 = vand.u32 %v83, 4294901760
    %85 = vmatmul.f32.gmra.mxu0 %v84
    %v86 = vpop.f32.mrf.mxu0
    %v87 = vadd.f32 0.0, %v86
    %88 = vdwg.mxu0
    %89 = vmatpush.msra.mxu0 0.0
    %90 = vmatpush.msra.mxu0 0.0
    %91 = vmatpush.msra.mxu0 0.0
    %92 = vmatpush.msra.mxu0 0.0
    %93 = vmatpush.msra.mxu0 0.0
    %94 = vmatpush.msra.mxu0 0.0
    %95 = vmatpush.msra.mxu0 0.0
    %96 = vmatpush.msra.mxu0 0.0
    %97 = vmatpush.msra.mxu0 0.0
    %98 = vmatpush.msra.mxu0 0.0
    %99 = vmatpush.msra.mxu0 0.0
    %100 = vmatpush.msra.mxu0 0.0
    %v101 = vand.u32 %v55, 4294901760
    %v102 = vsub.f32 %v55, %v101
    %v103 = vand.u32 %v102, 4294901760
    %v104 = vsub.f32 %v102, %v103
    %v105 = vand.u32 %v104, 4294901760
    %106 = vmatpush.msra.mxu0 %v105
    %v107 = vand.u32 %v54, 4294901760
    %v108 = vsub.f32 %v54, %v107
    %v109 = vand.u32 %v108, 4294901760
    %v110 = vsub.f32 %v108, %v109
    %v111 = vand.u32 %v110, 4294901760
    %112 = vmatpush.msra.mxu0 %v111
    %v113 = vand.u32 %v53, 4294901760
    %v114 = vsub.f32 %v53, %v113
    %v115 = vand.u32 %v114, 4294901760
    %v116 = vsub.f32 %v114, %v115
    %v117 = vand.u32 %v116, 4294901760
    %118 = vmatpush.msra.mxu0 %v117
    %v119 = vand.u32 %v52, 4294901760
    %v120 = vsub.f32 %v52, %v119
    %v121 = vand.u32 %v120, 4294901760
    %v122 = vsub.f32 %v120, %v121
    %v123 = vand.u32 %v122, 4294901760
    %124 = vmatpush.msra.mxu0 %v123
    %v125 = vand.u32 %v58, 4294901760
    %126 = vmatmul.f32.gmra.mxu0 %v125
    %v127 = vpop.f32.mrf.mxu0
    %v128 = vadd.f32 %v87, %v127
    %129 = vdwg.mxu0
    %130 = vmatpush.msra.mxu0 0.0
    %131 = vmatpush.msra.mxu0 0.0
    %132 = vmatpush.msra.mxu0 0.0
    %133 = vmatpush.msra.mxu0 0.0
    %134 = vmatpush.msra.mxu0 0.0
    %135 = vmatpush.msra.mxu0 0.0
    %136 = vmatpush.msra.mxu0 0.0
    %137 = vmatpush.msra.mxu0 0.0
    %138 = vmatpush.msra.mxu0 0.0
    %139 = vmatpush.msra.mxu0 0.0
    %140 = vmatpush.msra.mxu0 0.0
    %141 = vmatpush.msra.mxu0 0.0
    %v142 = vand.u32 %v55, 4294901760
    %v143 = vsub.f32 %v55, %v142
    %144 = vmatpush.msra.mxu0 %v143
    %v145 = vand.u32 %v54, 4294901760
    %v146 = vsub.f32 %v54, %v145
    %147 = vmatpush.msra.mxu0 %v146
    %v148 = vand.u32 %v53, 4294901760
    %v149 = vsub.f32 %v53, %v148
    %150 = vmatpush.msra.mxu0 %v149
    %v151 = vand.u32 %v52, 4294901760
    %v152 = vsub.f32 %v52, %v151
    %153 = vmatpush.msra.mxu0 %v152
    %v154 = vand.u32 %v58, 4294901760
    %v155 = vsub.f32 %v58, %v154
    %156 = vmatmul.f32.gmra.mxu0 %v155
    %v157 = vpop.f32.mrf.mxu0
    %v158 = vadd.f32 %v128, %v157
    %159 = vdwg.mxu0
    %160 = vmatpush.msra.mxu0 0.0
    %161 = vmatpush.msra.mxu0 0.0
    %162 = vmatpush.msra.mxu0 0.0
    %163 = vmatpush.msra.mxu0 0.0
    %164 = vmatpush.msra.mxu0 0.0
    %165 = vmatpush.msra.mxu0 0.0
    %166 = vmatpush.msra.mxu0 0.0
    %167 = vmatpush.msra.mxu0 0.0
    %168 = vmatpush.msra.mxu0 0.0
    %169 = vmatpush.msra.mxu0 0.0
    %170 = vmatpush.msra.mxu0 0.0
    %171 = vmatpush.msra.mxu0 0.0
    %v172 = vand.u32 %v55, 4294901760
    %173 = vmatpush.msra.mxu0 %v172
    %v174 = vand.u32 %v54, 4294901760
    %175 = vmatpush.msra.mxu0 %v174
    %v176 = vand.u32 %v53, 4294901760
    %177 = vmatpush.msra.mxu0 %v176
    %v178 = vand.u32 %v52, 4294901760
    %179 = vmatpush.msra.mxu0 %v178
    %v180 = vand.u32 %v58, 4294901760
    %v181 = vsub.f32 %v58, %v180
    %v182 = vand.u32 %v181, 4294901760
    %183 = vmatmul.f32.gmra.mxu0 %v182
    %v184 = vpop.f32.mrf.mxu0
    %v185 = vadd.f32 %v158, %v184
    %186 = vdwg.mxu0
    %187 = vmatpush.msra.mxu0 0.0
    %188 = vmatpush.msra.mxu0 0.0
    %189 = vmatpush.msra.mxu0 0.0
    %190 = vmatpush.msra.mxu0 0.0
    %191 = vmatpush.msra.mxu0 0.0
    %192 = vmatpush.msra.mxu0 0.0
    %193 = vmatpush.msra.mxu0 0.0
    %194 = vmatpush.msra.mxu0 0.0
    %195 = vmatpush.msra.mxu0 0.0
    %196 = vmatpush.msra.mxu0 0.0
    %197 = vmatpush.msra.mxu0 0.0
    %198 = vmatpush.msra.mxu0 0.0
    %v199 = vand.u32 %v55, 4294901760
    %v200 = vsub.f32 %v55, %v199
    %v201 = vand.u32 %v200, 4294901760
    %202 = vmatpush.msra.mxu0 %v201
    %v203 = vand.u32 %v54, 4294901760
    %v204 = vsub.f32 %v54, %v203
    %v205 = vand.u32 %v204, 4294901760
    %206 = vmatpush.msra.mxu0 %v205
    %v207 = vand.u32 %v53, 4294901760
    %v208 = vsub.f32 %v53, %v207
    %v209 = vand.u32 %v208, 4294901760
    %210 = vmatpush.msra.mxu0 %v209
    %v211 = vand.u32 %v52, 4294901760
    %v212 = vsub.f32 %v52, %v211
    %v213 = vand.u32 %v212, 4294901760
    %214 = vmatpush.msra.mxu0 %v213
    %v215 = vand.u32 %v58, 4294901760
    %216 = vmatmul.f32.gmra.mxu0 %v215
    %v217 = vpop.f32.mrf.mxu0
    %v218 = vadd.f32 %v185, %v217
    %219 = vdwg.mxu0
    %220 = vmatpush.msra.mxu0 0.0
    %221 = vmatpush.msra.mxu0 0.0
    %222 = vmatpush.msra.mxu0 0.0
    %223 = vmatpush.msra.mxu0 0.0
    %224 = vmatpush.msra.mxu0 0.0
    %225 = vmatpush.msra.mxu0 0.0
    %226 = vmatpush.msra.mxu0 0.0
    %227 = vmatpush.msra.mxu0 0.0
    %228 = vmatpush.msra.mxu0 0.0
    %229 = vmatpush.msra.mxu0 0.0
    %230 = vmatpush.msra.mxu0 0.0
    %231 = vmatpush.msra.mxu0 0.0
    %v232 = vand.u32 %v55, 4294901760
    %233 = vmatpush.msra.mxu0 %v232
    %v234 = vand.u32 %v54, 4294901760
    %235 = vmatpush.msra.mxu0 %v234
    %v236 = vand.u32 %v53, 4294901760
    %237 = vmatpush.msra.mxu0 %v236
    %v238 = vand.u32 %v52, 4294901760
    %239 = vmatpush.msra.mxu0 %v238
    %v240 = vand.u32 %v58, 4294901760
    %241 = vmatmul.f32.gmra.mxu0 %v240
    %v242 = vpop.f32.mrf.mxu0
    %v243 = vadd.f32 %v218, %v242
    %244 = vdwg.mxu0
    %v245 = vadd.f32 %v50, %v243
    %246 = vst [vmem:[#allocation2] sm:$0xff] %v245
    // Predicated region
    $region26: #{tpu_custom_call.1} parent=1 // pred_check
      %p247 = pneg %p45
    $region27: #{tpu_custom_call.1} parent=1 // pred_check_branch
      %249 = sbr.rel (%p247) target = $region29
    $region28: #{tpu_custom_call.1} parent=1 // pred_region
      %v250 = vld [vmem:[#allocation2] sm:$0xff]
      %v251 = vld [vmem:[%s2] sm:$0x1]
      %v253 = vperm.slane %v251, 0
      %v255 = vadd.f32 %v250, %v253
      %256 = vst [vmem:[#allocation8] sm:$0xff] %v255
    $region29: #{tpu_custom_call.1} parent=1 // pred_fallthru
      _
    // Predicated region
    $region30: #{tpu_custom_call.1} parent=1 // pred_check
      _
    $region31: #{tpu_custom_call.1} parent=1 // pred_check_branch
      %258 = sbr.rel (0) target = $region33
    $region32: #{tpu_custom_call.1} parent=1 // pred_region
      %260 = vsyncadd [#allocation5], 0
      %s262 = sshll.u32 [#allocation8], 4
      %s263 = int_to_ptr.vmem [resolvable:$true] %s262
      %s264 = sshll.u32 %s3, 4
      %s265 = int_to_ptr.hbm [resolvable:$true] %s264
      %267 = dma.vmem_to_hbm [thread:$0]  %s263, 128, %s265, [#allocation5]
    $region33: #{tpu_custom_call.1} parent=1 // pred_fallthru
      _
    // Predicated region
    $region34: #{tpu_custom_call.1} parent=1 // pred_check
      _
    $region35: #{tpu_custom_call.1} parent=1 // pred_check_branch
      %269 = sbr.rel (0) target = $region37
    $region36: #{tpu_custom_call.1} parent=1 // pred_region
      %271 = dma.done [#allocation5], 128
    $region37: #{tpu_custom_call.1} parent=1 // pred_fallthru
      _
    %272 = vsyncpa [#allocation4], 1
    %273 = vsyncpa [#allocation7], 1
    %274 = vsyncpa [#allocation5], 1

</llo_original>
